<compile_context>
chip_gen: v6e
topology: v6e:2x2x1
jax: 0.10.0
libtpu: 0.0.40
codegen_flags: <defaults>
</compile_context>

<pallas_src>
import functools
import re

import jax
import jax.numpy as jnp
from jax.experimental import pallas as pl
from jax.experimental.pallas import tpu as pltpu


def autopad(k, p=None):
    if p is None:
        p = k // 2 if isinstance(k, int) else [x // 2 for x in k]
    return p


def _round_up(x, m):
    return ((x + m - 1) // m) * m


def _tpu_generation():
    try:
        kind = jax.devices()[0].device_kind.lower()
        m = re.search(r"v(\d+)", kind)
        if m:
            return int(m.group(1))
    except Exception:
        pass
    return 6


def _tpu_vmem_capacity(gen):
    try:
        cap = int(pltpu.get_tpu_info().vmem_capacity_bytes)
        if cap > 0:
            return cap
    except Exception:
        pass
    return (64 if gen >= 7 else 128) * 1024 * 1024


def _conv_bn_act_kernel(p_ref, w_ref, b_ref, o_ref, acc_ref, *, apply_act):
    """One (tm,tk)x(tk,tn) tile: matmul (f32 acc) -> BN shift -> SiLU."""
    k = pl.program_id(3)

    @pl.when(k == 0)
    def _():
        acc_ref[...] = jnp.zeros_like(acc_ref)

    acc_ref[...] += jnp.dot(p_ref[...], w_ref[...],
                            preferred_element_type=jnp.float32)

    @pl.when(k == pl.num_programs(3) - 1)
    def _():
        z = acc_ref[...] + b_ref[...]          # per-output-channel shift (BN)
        if apply_act:
            # SiLU: z * sigmoid(z); reciprocal on the EUP slot.
            z = z * pl.reciprocal(1.0 + jnp.exp(-z), approx=True)
        o_ref[...] = z.astype(o_ref.dtype)


def conv_bn_silu(x, w, gamma, beta, running_mean, running_var, *,
                 stride=1, padding=None, groups=1, eps=1e-5, act=True):
    """Forward pass of the PyTorch `Conv` module (Conv2d + BN + SiLU), NCHW."""
    B, C1, H, W = x.shape
    C2, C1g, K, K2 = w.shape
    assert K == K2, "square kernels only"
    assert C1 % groups == 0 and C2 % groups == 0 and C1g == C1 // groups

    p = autopad(K, padding)
    s = int(stride)
    H_out = (H + 2 * p - K) // s + 1
    W_out = (W + 2 * p - K) // s + 1

    f32 = jnp.float32
    bf16 = jnp.bfloat16
    out_dtype = x.dtype
    out_bytes = jnp.dtype(out_dtype).itemsize

    # Fold inference BatchNorm:  y = conv * scale + shift ; scale goes into W.
    inv_std = jax.lax.rsqrt(running_var.astype(f32) + eps)
    scale = gamma.astype(f32) * inv_std
    shift = beta.astype(f32) - running_mean.astype(f32) * scale

    # Spatial zero-pad + channels-last so channels sit on the lane dimension.
    xp = jnp.pad(x, ((0, 0), (0, 0), (p, p), (p, p)))
    x_nhwc = jnp.transpose(xp, (0, 2, 3, 1))           # (B, Hp, Wp, C1)

    c1g = C1 // groups
    c2g = C2 // groups
    M = B * H_out * W_out
    Kd = K * K * c1g

    # ---- Generation-aware, lane-dense, VMEM-budgeted tiling -----------------
    LANE = 128
    gen = _tpu_generation()
    vmem_cap = _tpu_vmem_capacity(gen)
    VMEM_BUDGET = (vmem_cap * 5) // 8                  # ~80 MiB (v5e/v6e), ~40 MiB (v7x)
    vmem_limit = (vmem_cap * 3) // 4                   # ~96 MiB / ~48 MiB

    # 256-wide N tile for the 2x256x256 MXUs on v6e/v7x; 128 on v5e.
    tn = 256 if (gen >= 6 and c2g > LANE) else LANE
    N_pad = _round_up(c2g, tn)
    Kd_pad = _round_up(Kd, LANE)

    # Contraction tile: keep the double-buffered bf16 weight block <= 25% of
    # budget; split K across an "arbitrary" reduction axis when it doesn't fit.
    w_buf_cap = VMEM_BUDGET // 4
    tk_max = max(LANE, ((w_buf_cap // (2 * tn * 2)) // LANE) * LANE)
    tk = Kd_pad if tk_max >= Kd_pad else tk_max
    Kd_pad = _round_up(Kd_pad, tk)
    nk = Kd_pad // tk

    # Row tile from the remaining budget (bf16 patches + out rows + f32 acc).
    fixed = 2 * (tk * tn * 2) + 2 * (tn * 4)           # dbl-buffered weights + shift
    per_row = 2 * (tk * 2) + 2 * (tn * out_bytes) + tn * 4
    tm = max(32, (VMEM_BUDGET - fixed) // per_row)
    tm = min(int(tm), 4096, _round_up(M, 32))
    tm = (tm // 32) * 32                               # dtype-safe sublane multiple
    # Megacore guard (v7x has 2 TCs): make sure there are >= 2 parallel tiles.
    if groups * (N_pad // tn) == 1 and M >= 64:
        tm = min(tm, _round_up(-(-M // 2), 32))
    tm = max(32, tm)
    M_pad = _round_up(M, tm)

    # ---- Build bf16 im2col patches, BN-scaled bf16 weights, f32 shift -------
    patch_list, w_list, shift_list = [], [], []
    for gi in range(groups):
        xg = x_nhwc[..., gi * c1g:(gi + 1) * c1g]
        cols = []
        for kh in range(K):
            for kw in range(K):
                cols.append(jax.lax.slice(
                    xg,
                    (0, kh, kw, 0),
                    (B, kh + s * (H_out - 1) + 1, kw + s * (W_out - 1) + 1, c1g),
                    (1, s, s, 1)))
        patches = jnp.concatenate(cols, axis=-1).reshape(M, Kd)
        patches = jnp.pad(patches, ((0, M_pad - M), (0, Kd_pad - Kd))).astype(bf16)
        patch_list.append(patches)

        wg = w[gi * c2g:(gi + 1) * c2g].astype(f32)                # (c2g, c1g, K, K)
        wg = jnp.transpose(wg, (2, 3, 1, 0)).reshape(Kd, c2g)      # matches patch order
        wg = wg * scale[gi * c2g:(gi + 1) * c2g][None, :]          # fold BN scale
        wg = jnp.pad(wg, ((0, Kd_pad - Kd), (0, N_pad - c2g))).astype(bf16)
        w_list.append(wg)

        shift_list.append(
            jnp.pad(shift[gi * c2g:(gi + 1) * c2g], (0, N_pad - c2g)).reshape(1, N_pad))

    patches_g = jnp.stack(patch_list)      # (groups, M_pad, Kd_pad)  bf16
    weights_g = jnp.stack(w_list)          # (groups, Kd_pad, N_pad)  bf16
    shift_g = jnp.stack(shift_list)        # (groups, 1, N_pad)       f32

    # ---- Single fused pallas_call over (group, rows, out-ch, K-chunks) ------
    kernel = functools.partial(_conv_bn_act_kernel, apply_act=bool(act))
    grid = (groups, M_pad // tm, N_pad // tn, nk)

    y = pl.pallas_call(
        kernel,
        out_shape=jax.ShapeDtypeStruct((groups, M_pad, N_pad), out_dtype),
        grid_spec=pltpu.PrefetchScalarGridSpec(
            num_scalar_prefetch=0,
            grid=grid,
            in_specs=[
                pl.BlockSpec((None, tm, tk), lambda g, i, j, k: (g, i, k)),   # patches
                pl.BlockSpec((None, tk, tn), lambda g, i, j, k: (g, k, j)),   # weights
                pl.BlockSpec((None, 1, tn), lambda g, i, j, k: (g, 0, j)),    # BN shift
            ],
            out_specs=pl.BlockSpec((None, tm, tn), lambda g, i, j, k: (g, i, j)),
            scratch_shapes=[pltpu.VMEM((tm, tn), jnp.float32)],               # f32 acc
        ),
        compiler_params=pltpu.CompilerParams(
            dimension_semantics=("parallel", "parallel", "parallel", "arbitrary"),
            vmem_limit_bytes=int(vmem_limit),
        ),
    )(patches_g, weights_g, shift_g)

    y = y[:, :M, :c2g]                                  # (groups, M, c2g)
    y = jnp.transpose(y, (1, 0, 2)).reshape(M, C2)      # group-major channel order
    y = y.reshape(B, H_out, W_out, C2)
    return jnp.transpose(y, (0, 3, 1, 2))               # back to NCHW


if __name__ == "__main__":
    key = jax.random.PRNGKey(0)
    B, C1, C2, H, W = 2, 4, 8, 16, 16
    K, S, G = 3, 1, 1
    EPS = 1e-5

    k_x, k_w, k_g, k_b, k_m, k_v = jax.random.split(key, 6)
    x = jax.random.normal(k_x, (B, C1, H, W), dtype=jnp.float32)
    w = jax.random.normal(k_w, (C2, C1 // G, K, K), dtype=jnp.float32) * 0.1
    gamma = 1.0 + 0.1 * jax.random.normal(k_g, (C2,), dtype=jnp.float32)
    beta = 0.1 * jax.random.normal(k_b, (C2,), dtype=jnp.float32)
    r_mean = 0.1 * jax.random.normal(k_m, (C2,), dtype=jnp.float32)
    r_var = jax.random.uniform(k_v, (C2,), dtype=jnp.float32, minval=0.5, maxval=1.5)

    out = conv_bn_silu(x, w, gamma, beta, r_mean, r_var,
                       stride=S, padding=None, groups=G, eps=EPS, act=True)
    out = jax.block_until_ready(out)

    # Pure-JAX reference: Conv2d(no bias) -> BatchNorm2d(running stats) -> SiLU
    p = autopad(K, None)
    conv = jax.lax.conv_general_dilated(
        x, w, window_strides=(S, S), padding=((p, p), (p, p)),
        dimension_numbers=("NCHW", "OIHW", "NCHW"), feature_group_count=G)
    bn = ((conv - r_mean[None, :, None, None]) *
          (gamma[None, :, None, None] / jnp.sqrt(r_var[None, :, None, None] + EPS)) +
          beta[None, :, None, None])
    ref = bn * jax.nn.sigmoid(bn)

    assert out.shape == ref.shape
    max_err = float(jnp.max(jnp.abs(out - ref)))
    # bf16-streamed operands with f32 accumulation: small, bounded drift.
    assert jnp.allclose(out, ref, atol=2e-2, rtol=2e-2), f"max_err={max_err}"

    print("KERNEL_OK")
</pallas_src>

<mosaic_0001>
module attributes {stable_mosaic.version = 11 : i64} {
  func.func @_conv_bn_act_kernel(%arg0: i32, %arg1: i32, %arg2: i32, %arg3: i32, %arg4: memref<1x256x128xbf16, #tpu.memory_space<vmem>>, %arg5: memref<1x128x128xbf16, #tpu.memory_space<vmem>>, %arg6: memref<1x1x128xf32, #tpu.memory_space<vmem>>, %arg7: memref<1x256x128xf32, #tpu.memory_space<vmem>>, %arg8: memref<256x128xf32, #tpu.memory_space<vmem>>) attributes {dimension_semantics = [#tpu.dimension_semantics<parallel>, #tpu.dimension_semantics<parallel>, #tpu.dimension_semantics<parallel>, #tpu.dimension_semantics<arbitrary>], iteration_bounds = array<i64: 1, 2, 1, 1>, scalar_prefetch = 0 : i64, scratch_operands = 1 : i64, tpu.core_type = #tpu.core_type<tc>, window_params = [{transform_indices = @transform_0, window_bounds = array<i64: 1, 256, 128>}, {transform_indices = @transform_1, window_bounds = array<i64: 1, 128, 128>}, {transform_indices = @transform_2, window_bounds = array<i64: 1, 1, 128>}, {transform_indices = @transform_3, window_bounds = array<i64: 1, 256, 128>}]} {
    %c0_i32 = arith.constant 0 : i32
    %0 = arith.cmpi eq, %arg3, %c0_i32 : i32
    %1 = arith.extui %0 : i1 to i32
    %c0_i32_0 = arith.constant 0 : i32
    %2 = arith.cmpi ne, %1, %c0_i32_0 : i32
    scf.if %2 {
      %cst_12 = arith.constant 0.000000e+00 : f32
      %14 = vector.broadcast %cst_12 : f32 to vector<256x128xf32>
      %c0_13 = arith.constant 0 : index
      %c0_14 = arith.constant 0 : index
      %15 = vector.load %arg8[%c0_13, %c0_14] : memref<256x128xf32, #tpu.memory_space<vmem>>, vector<256x128xf32>
      tpu.vector_store %arg8[%c0_13, %c0_14], %14 {strides = array<i32>} : memref<256x128xf32, #tpu.memory_space<vmem>>, vector<256x128xf32>,
    } else {
    }
    %c0 = arith.constant 0 : index
    %c0_1 = arith.constant 0 : index
    %3 = vector.load %arg8[%c0, %c0_1] : memref<256x128xf32, #tpu.memory_space<vmem>>, vector<256x128xf32>
    %c0_2 = arith.constant 0 : index
    %c0_3 = arith.constant 0 : index
    %c0_4 = arith.constant 0 : index
    %4 = vector.load %arg4[%c0_2, %c0_3, %c0_4] : memref<1x256x128xbf16, #tpu.memory_space<vmem>>, vector<1x256x128xbf16>
    %5 = vector.shape_cast %4 : vector<1x256x128xbf16> to vector<256x128xbf16>
    %c0_5 = arith.constant 0 : index
    %c0_6 = arith.constant 0 : index
    %c0_7 = arith.constant 0 : index
    %6 = vector.load %arg5[%c0_5, %c0_6, %c0_7] : memref<1x128x128xbf16, #tpu.memory_space<vmem>>, vector<1x128x128xbf16>
    %7 = vector.shape_cast %6 : vector<1x128x128xbf16> to vector<128x128xbf16>
    %cst = arith.constant dense<0.000000e+00> : vector<256x128xf32>
    %8 = tpu.matmul %5, %7, %cst {dimension_numbers = #tpu.dot_dimension_numbers<[1], [0], [0], [1], [0, 0, 1, 1], [], []>} : vector<256x128xbf16>, vector<128x128xbf16>, vector<256x128xf32> -> vector<256x128xf32>
    %9 = arith.addf %3, %8 : vector<256x128xf32>
    %c0_8 = arith.constant 0 : index
    %c0_9 = arith.constant 0 : index
    %10 = vector.load %arg8[%c0_8, %c0_9] : memref<256x128xf32, #tpu.memory_space<vmem>>, vector<256x128xf32>
    tpu.vector_store %arg8[%c0_8, %c0_9], %9 {strides = array<i32>} : memref<256x128xf32, #tpu.memory_space<vmem>>, vector<256x128xf32>,
    %c0_i32_10 = arith.constant 0 : i32
    %11 = arith.cmpi eq, %arg3, %c0_i32_10 : i32
    %12 = arith.extui %11 : i1 to i32
    %c0_i32_11 = arith.constant 0 : i32
    %13 = arith.cmpi ne, %12, %c0_i32_11 : i32
    scf.if %13 {
      %c0_12 = arith.constant 0 : index
      %c0_13 = arith.constant 0 : index
      %14 = vector.load %arg8[%c0_12, %c0_13] : memref<256x128xf32, #tpu.memory_space<vmem>>, vector<256x128xf32>
      %c0_14 = arith.constant 0 : index
      %c0_15 = arith.constant 0 : index
      %c0_16 = arith.constant 0 : index
      %15 = vector.load %arg6[%c0_14, %c0_15, %c0_16] : memref<1x1x128xf32, #tpu.memory_space<vmem>>, vector<1x1x128xf32>
      %16 = vector.shape_cast %15 : vector<1x1x128xf32> to vector<1x128xf32>
      %17 = vector.broadcast %16 : vector<1x128xf32> to vector<256x128xf32>
      %18 = arith.addf %14, %17 : vector<256x128xf32>
      %cst_17 = arith.constant 0.000000e+00 : f32
      %19 = vector.broadcast %cst_17 : f32 to vector<256x128xf32>
      %20 = arith.subf %19, %18 : vector<256x128xf32>
      %21 = math.exp %20 : vector<256x128xf32>
      %cst_18 = arith.constant 1.000000e+00 : f32
      %22 = vector.broadcast %cst_18 : f32 to vector<256x128xf32>
      %23 = arith.addf %22, %21 : vector<256x128xf32>
      %24 = tpu.reciprocal %23 {approx = true} : vector<256x128xf32> -> vector<256x128xf32>
      %25 = arith.mulf %18, %24 : vector<256x128xf32>
      %c0_19 = arith.constant 0 : index
      %c0_20 = arith.constant 0 : index
      %c0_21 = arith.constant 0 : index
      %26 = vector.load %arg7[%c0_19, %c0_20, %c0_21] : memref<1x256x128xf32, #tpu.memory_space<vmem>>, vector<1x256x128xf32>
      %27 = vector.shape_cast %26 : vector<1x256x128xf32> to vector<256x128xf32>
      %28 = vector.shape_cast %25 : vector<256x128xf32> to vector<1x256x128xf32>
      tpu.vector_store %arg7[%c0_19, %c0_20, %c0_21], %28 {strides = array<i32>} : memref<1x256x128xf32, #tpu.memory_space<vmem>>, vector<1x256x128xf32>,
    } else {
    }
    return
  }
  func.func @transform_0(%arg0: i32, %arg1: i32, %arg2: i32, %arg3: i32) -> (i32, i32, i32) {
    %c0_i32 = arith.constant 0 : i32
    return %arg0, %arg1, %arg3 : i32, i32, i32
  }
  func.func @transform_1(%arg0: i32, %arg1: i32, %arg2: i32, %arg3: i32) -> (i32, i32, i32) {
    %c0_i32 = arith.constant 0 : i32
    return %arg0, %arg3, %arg2 : i32, i32, i32
  }
  func.func @transform_2(%arg0: i32, %arg1: i32, %arg2: i32, %arg3: i32) -> (i32, i32, i32) {
    %c0_i32 = arith.constant 0 : i32
    %c0_i32_0 = arith.constant 0 : i32
    return %arg0, %c0_i32, %arg2 : i32, i32, i32
  }
  func.func @transform_3(%arg0: i32, %arg1: i32, %arg2: i32, %arg3: i32) -> (i32, i32, i32) {
    %c0_i32 = arith.constant 0 : i32
    return %arg0, %arg1, %arg2 : i32, i32, i32
  }
}

</mosaic_0001>

<llo_original>
// kernel: tpu_custom_call.1
$region0: #{tpu_custom_call.1}
  #allocation0 [shape = 'u32[]', space=smem, size = 0x4, offset = 0x4, fixed_abs, tag = 'smem constant byte address 0x4 - core index']
  #allocation1 [shape = 'u32[144,128]{1,0:T(1,128)}', space=vmem, size = 0x12000, scoped, tag = 'internal scratch']
  #allocation2 [shape = 'f32[256,128]{1,0:T(8,128)}', space=vmem, size = 0x20000, scoped, tag = 'scratch operand']
  %s0 = inlined_call_operand.hbm [shape: bf16[1,512,128], index: 0, kind: input, shape index: {}]
  %s1 = inlined_call_operand.hbm [shape: bf16[1,128,128], index: 1, kind: input, shape index: {}]
  %s2 = inlined_call_operand.vmem [shape: f32[1,1,128], index: 2, kind: input, shape index: {}]
  %s3 = inlined_call_operand.hbm [shape: f32[1,512,128], index: 3, kind: output, shape index: {}]
  %s4 = sld [smem:[#allocation0]]
  $region61: #{tpu_custom_call.1} parent=0
    _
  %s6 = ssub.s32 1, %s4
  %s7 = scalar_select 0, %s6, %s4
  $region1: #{tpu_custom_call.1} parent=0
    #allocation3 [shape = 'u8[131072]{0}', space=vmem, size = 0x20000, scoped, tag = 'input window, operand 0']
    #allocation4 [shape = 's32[2]{0}', space=sflag, size = 0x8, scoped, tag = 'scoped memory for tpu_custom_call.1']
    #allocation5 [shape = 's32[2]{0}', space=sflag, size = 0x8, scoped, tag = 'scoped memory for tpu_custom_call.1']
    #allocation6 [shape = 'u8[32768]{0}', space=vmem, size = 0x8000, scoped, tag = 'input window, operand 1, single buffered']
    #allocation7 [shape = 's32[1]{0}', space=sflag, size = 0x4, scoped, tag = 'scoped memory for tpu_custom_call.1']
    #allocation8 [shape = 'u8[262144]{0}', space=vmem, size = 0x40000, scoped, tag = 'output window, operand 0']
    %8 = vsyncpa [#allocation4], 0
    %s9 = scalar_lea.sflag [#allocation4], 1
    %10 = vsyncpa %s9, 0
    %11 = vsyncpa [#allocation7], 0
    %12 = vsyncpa [#allocation5], 0
    %s13 = scalar_lea.sflag [#allocation5], 1
    %14 = vsyncpa %s13, 0
    loop: start=0, step=1, limit=4
    $region2: #{tpu_custom_call.1} parent=1 // loop_pre_header
      _
    $region3: #{tpu_custom_call.1} parent=1 // loop_header
      %s16 = sphi 0, %s20
      %p17 = scmp.ge.s32.totalorder %s16, 4
      %s23 = sphi 0, %s49
      %s24 = sphi 0, %s45
      %s25 = sphi 0, %s41
      %s26 = sphi 0, %s37
      %s27 = sphi 0, %s23
      %s28 = sphi 0, %s24
      %s29 = sphi 0, %s25
      %s30 = sphi 0, %s26
      %s31 = sphi 0, %s27
      %s32 = sphi 0, %s28
      %s33 = sphi 0, %s29
      %s34 = sphi 0, %s30
      %s56 = sphi 0, %s58
      %s59 = sphi 0, %s56
      %s60 = sphi 0, %s59
      %s76 = sphi 0, %s60
      %s86 = sphi 0, %s88
      %s89 = sphi 0, %s86
      %s90 = sphi 0, %s89
      %s106 = sphi 0, %s90
      %s114 = sphi 0, %s116
      %s117 = sphi 0, %s114
      %s118 = sphi 0, %s117
      %s134 = sphi 0, %s118
      %s144 = sphi 0, %s146
      %s147 = sphi 0, %s144
      %s148 = sphi 0, %s147
      %s164 = sphi 0, %s148
    $region4: #{tpu_custom_call.1} parent=1 // loop_header_branch
      %19 = sbr.rel (%p17) target = $region8
    $region5: #{tpu_custom_call.1} parent=1 // loop_body
      %s21 = ssub.s32 %s16, 1
      %s22 = ssub.s32 %s16, 2
      %s35 = sadd.s32 1, %s26
      %p36 = scmp.ge.s32.totalorder %s35, 1
      %s37 = scalar_select %p36, 0, %s35
      %s38 = sadd.s32 1, %s25
      %s39 = scalar_select %p36, %s38, %s25
      %p40 = scmp.ge.s32.totalorder %s39, 1
      %s41 = scalar_select %p40, 0, %s39
      %s42 = sadd.s32 1, %s24
      %s43 = scalar_select %p40, %s42, %s24
      %p44 = scmp.ge.s32.totalorder %s43, 2
      %s45 = scalar_select %p44, 0, %s43
      %s46 = sadd.s32 1, %s23
      %s47 = scalar_select %p44, %s46, %s23
      %p48 = scmp.ge.s32.totalorder %s47, 1
      %s49 = scalar_select %p48, 0, %s47
      %s50 = ssub.s32 %s23, %s49
      %s51 = ssub.s32 %s24, %s45
      %s52 = sor.u32 %s50, %s51
      %s53 = ssub.s32 %s26, %s37
      %s54 = sor.u32 %s52, %s53
      %p55 = scmp.eq.s32.totalorder %s54, 0
      %s57 = sadd.s32 %s56, 1
      %s58 = scalar_select %p55, %s56, %s57
      %p61 = pneg %p55
      %p62 = scmp.eq.s32.totalorder %s16, 1
      %p63 = por %p61, %p62
      %p64 = scmp.ne.s32.totalorder %s56, %s59
      %p65 = scmp.eq.s32.totalorder %s16, 0
      %p66 = por %p64, %p65
      %p67 = scmp.ne.s32.totalorder %s56, %s59
      %p68 = scmp.eq.s32.totalorder %s21, 1
      %p69 = por %p67, %p68
      %p70 = scmp.ne.s32.totalorder %s59, %s60
      %p71 = scmp.eq.s32.totalorder %s21, 0
      %p72 = por %p70, %p71
      %p73 = scmp.ne.s32.totalorder %s59, %s60
      %p74 = scmp.eq.s32.totalorder %s22, 1
      %p75 = por %p73, %p74
      %p77 = scmp.ne.s32.totalorder %s60, %s76
      %p78 = scmp.eq.s32.totalorder %s22, 0
      %p79 = por %p77, %p78
      %s80 = ssub.s32 %s23, %s49
      %s81 = ssub.s32 %s26, %s37
      %s82 = sor.u32 %s80, %s81
      %s83 = ssub.s32 %s25, %s41
      %s84 = sor.u32 %s82, %s83
      %p85 = scmp.eq.s32.totalorder %s84, 0
      %s87 = sadd.s32 %s86, 1
      %s88 = scalar_select %p85, %s86, %s87
      %p91 = pneg %p85
      %p92 = scmp.eq.s32.totalorder %s16, 1
      %p93 = por %p91, %p92
      %p94 = scmp.ne.s32.totalorder %s86, %s89
      %p95 = scmp.eq.s32.totalorder %s16, 0
      %p96 = por %p94, %p95
      %p97 = scmp.ne.s32.totalorder %s86, %s89
      %p98 = scmp.eq.s32.totalorder %s21, 1
      %p99 = por %p97, %p98
      %p100 = scmp.ne.s32.totalorder %s89, %s90
      %p101 = scmp.eq.s32.totalorder %s21, 0
      %p102 = por %p100, %p101
      %p103 = scmp.ne.s32.totalorder %s89, %s90
      %p104 = scmp.eq.s32.totalorder %s22, 1
      %p105 = por %p103, %p104
      %p107 = scmp.ne.s32.totalorder %s90, %s106
      %p108 = scmp.eq.s32.totalorder %s22, 0
      %p109 = por %p107, %p108
      %s110 = ssub.s32 %s23, %s49
      %s111 = ssub.s32 %s25, %s41
      %s112 = sor.u32 %s110, %s111
      %p113 = scmp.eq.s32.totalorder %s112, 0
      %s115 = sadd.s32 %s114, 1
      %s116 = scalar_select %p113, %s114, %s115
      %p119 = pneg %p113
      %p120 = scmp.eq.s32.totalorder %s16, 1
      %p121 = por %p119, %p120
      %p122 = scmp.ne.s32.totalorder %s114, %s117
      %p123 = scmp.eq.s32.totalorder %s16, 0
      %p124 = por %p122, %p123
      %p125 = scmp.ne.s32.totalorder %s114, %s117
      %p126 = scmp.eq.s32.totalorder %s21, 1
      %p127 = por %p125, %p126
      %p128 = scmp.ne.s32.totalorder %s117, %s118
      %p129 = scmp.eq.s32.totalorder %s21, 0
      %p130 = por %p128, %p129
      %p131 = scmp.ne.s32.totalorder %s117, %s118
      %p132 = scmp.eq.s32.totalorder %s22, 1
      %p133 = por %p131, %p132
      %p135 = scmp.ne.s32.totalorder %s118, %s134
      %p136 = scmp.eq.s32.totalorder %s22, 0
      %p137 = por %p135, %p136
      %s138 = ssub.s32 %s23, %s49
      %s139 = ssub.s32 %s24, %s45
      %s140 = sor.u32 %s138, %s139
      %s141 = ssub.s32 %s25, %s41
      %s142 = sor.u32 %s140, %s141
      %p143 = scmp.eq.s32.totalorder %s142, 0
      %s145 = sadd.s32 %s144, 1
      %s146 = scalar_select %p143, %s144, %s145
      %p149 = pneg %p143
      %p150 = scmp.eq.s32.totalorder %s16, 1
      %p151 = por %p149, %p150
      %p152 = scmp.ne.s32.totalorder %s144, %s147
      %p153 = scmp.eq.s32.totalorder %s16, 0
      %p154 = por %p152, %p153
      %p155 = scmp.ne.s32.totalorder %s144, %s147
      %p156 = scmp.eq.s32.totalorder %s21, 1
      %p157 = por %p155, %p156
      %p158 = scmp.ne.s32.totalorder %s147, %s148
      %p159 = scmp.eq.s32.totalorder %s21, 0
      %p160 = por %p158, %p159
      %p161 = scmp.ne.s32.totalorder %s147, %s148
      %p162 = scmp.eq.s32.totalorder %s22, 1
      %p163 = por %p161, %p162
      %p165 = scmp.ne.s32.totalorder %s148, %s164
      %p166 = scmp.eq.s32.totalorder %s22, 0
      %p167 = por %p165, %p166
      %p168 = scmp.le.s32.totalorder 1, %s16
      %p169 = scmp.lt.s32.totalorder %s16, 3
      %p170 = pnand %p168, %p169
      %p171 = pneg %p170
      // Predicated region
      $region9: #{tpu_custom_call.1} parent=5 // pred_check
        _
      $region10: #{tpu_custom_call.1} parent=5 // pred_check_branch
        %173 = sbr.rel (%p170) target = $region12
      $region11: #{tpu_custom_call.1} parent=5 // pred_region
        %s174 = ssub.s32 %s16, 1
        // Predicated region
        $region13: #{tpu_custom_call.1} parent=11 // pred_check
          %p175 = pneg %p102
        $region14: #{tpu_custom_call.1} parent=11 // pred_check_branch
          %177 = sbr.rel (%p175) target = $region16
        $region15: #{tpu_custom_call.1} parent=11 // pred_region
          %s178 = smul.u32 16, %s30
          %s180 = ssub.s32 1024, 1024
          %181 = vsyncadd [#allocation7], %s180
          %s182 = sadd.s32 %s29, %s178
          %s183 = smul.addr %s27, 16
          %s184 = sadd.s32 %s182, %s183
          %s185 = smul.addr %s184, 64
          %s186 = scalar_lea.hbm %s1, %s185
          %s187 = sshll.u32 [#allocation6], 4
          %s188 = int_to_ptr.vmem [resolvable:$true] %s187
          %193 = dma.hbm_to_vmem [thread:$0]  %s186, 1024, %s188, [#allocation7], 64, 64, 4
        $region16: #{tpu_custom_call.1} parent=11 // pred_fallthru
          _
        // Predicated region
        $region17: #{tpu_custom_call.1} parent=11 // pred_check
          %p194 = pneg %p130
        $region18: #{tpu_custom_call.1} parent=11 // pred_check_branch
          %196 = sbr.rel (%p194) target = $region20
        $region19: #{tpu_custom_call.1} parent=11 // pred_region
          %p197 = scmp.lt.s32.totalorder %s27, 0
          %s198 = scalar_select %p197, %s27, 0
          %p199 = scmp.lt.s32.totalorder %s29, 0
          %s200 = scalar_select %p199, %s29, 0
          %s201 = sadd.s32 %s200, %s198
          %s202 = scalar_lea.vmem %s2, %s201
        $region20: #{tpu_custom_call.1} parent=11 // pred_fallthru
          _
      $region12: #{tpu_custom_call.1} parent=5 // pred_fallthru
        _
      %p203 = scmp.lt.s32.totalorder %s16, 2
      // Predicated region
      $region21: #{tpu_custom_call.1} parent=5 // pred_check
        %p204 = pneg %p203
      $region22: #{tpu_custom_call.1} parent=5 // pred_check_branch
        %206 = sbr.rel (%p204) target = $region24
      $region23: #{tpu_custom_call.1} parent=5 // pred_region
        // Predicated region
        $region25: #{tpu_custom_call.1} parent=23 // pred_check
          %p207 = pneg %p66
        $region26: #{tpu_custom_call.1} parent=23 // pred_check_branch
          %209 = sbr.rel (%p207) target = $region28
        $region27: #{tpu_custom_call.1} parent=23 // pred_region
          %s210 = sand.u32 %s56, 1
          %s211 = scalar_lea.sflag [#allocation4], %s210
          %s212 = sand.u32 %s56, 1
          %s213 = smul.addr %s212, 128
          %s214 = scalar_lea.vmem [#allocation3], %s213
          %s215 = smul.u32 32, %s24
          %s217 = ssub.s32 2048, 2048
          %218 = vsyncadd %s211, %s217
          %s219 = sadd.s32 %s26, %s215
          %s220 = smul.addr %s23, 64
          %s221 = sadd.s32 %s219, %s220
          %s222 = smul.addr %s221, 64
          %s223 = scalar_lea.hbm %s0, %s222
          %s224 = sshll.u32 %s214, 4
          %s225 = int_to_ptr.vmem [resolvable:$true] %s224
          %230 = dma.hbm_to_vmem [thread:$0]  %s223, 2048, %s225, %s211, 64, 64, 4
        $region28: #{tpu_custom_call.1} parent=23 // pred_fallthru
          _
      $region24: #{tpu_custom_call.1} parent=5 // pred_fallthru
        _
      %p231 = scmp.le.s32.totalorder 1, %s16
      %p232 = scmp.lt.s32.totalorder %s16, 3
      %p233 = pnand %p231, %p232
      %p234 = pneg %p233
      // Predicated region
      $region29: #{tpu_custom_call.1} parent=5 // pred_check
        _
      $region30: #{tpu_custom_call.1} parent=5 // pred_check_branch
        %236 = sbr.rel (%p233) target = $region32
      $region31: #{tpu_custom_call.1} parent=5 // pred_region
        %s237 = ssub.s32 %s16, 1
        %s238 = sand.u32 %s59, 1
        %s239 = scalar_lea.sflag [#allocation4], %s238
        %s240 = sand.u32 %s59, 1
        %s241 = smul.addr %s240, 128
        %s242 = scalar_lea.vmem [#allocation3], %s241
        // Predicated region
        $region33: #{tpu_custom_call.1} parent=31 // pred_check
          %p243 = pneg %p72
        $region34: #{tpu_custom_call.1} parent=31 // pred_check_branch
          %245 = sbr.rel (%p243) target = $region36
        $region35: #{tpu_custom_call.1} parent=31 // pred_region
          %246 = dma.done %s239, 2048
        $region36: #{tpu_custom_call.1} parent=31 // pred_fallthru
          _
        // Predicated region
        $region37: #{tpu_custom_call.1} parent=31 // pred_check
          %p247 = pneg %p102
        $region38: #{tpu_custom_call.1} parent=31 // pred_check_branch
          %249 = sbr.rel (%p247) target = $region40
        $region39: #{tpu_custom_call.1} parent=31 // pred_region
          %250 = dma.done [#allocation7], 1024
        $region40: #{tpu_custom_call.1} parent=31 // pred_fallthru
          _
        %s251 = sand.u32 %s59, 1
        %s252 = scalar_lea.sflag [#allocation4], %s251
        %s253 = sand.u32 %s59, 1
        %s254 = smul.addr %s253, 128
        %s255 = scalar_lea.vmem [#allocation3], %s254
        %p256 = pneg %p72
        %p257 = pneg %p69
        %p258 = pneg %p102
        %p259 = pneg %p99
        %p260 = scmp.lt.s32.totalorder %s27, 0
        %s261 = scalar_select %p260, %s27, 0
        %p262 = scmp.lt.s32.totalorder %s29, 0
        %s263 = scalar_select %p262, %s29, 0
        %s264 = sadd.s32 %s263, %s261
        %s265 = scalar_lea.vmem %s2, %s264
        %p266 = pneg %p130
        %p267 = pneg %p127
        %p268 = pneg %p160
        %p269 = pneg %p157
        %s270 = sand.u32 %s147, 1
        %s271 = scalar_lea.sflag [#allocation5], %s270
        %s272 = sand.u32 %s147, 1
        %s273 = smul.addr %s272, 256
        %s274 = scalar_lea.vmem [#allocation8], %s273
        %s275 = smul.u32 32, %s28
        %s276 = smul.u32 16, %s30
        %p277 = scmp.lt.s32.totalorder %s27, 0
        %s278 = scalar_select %p277, %s27, 0
        %p279 = scmp.lt.s32.totalorder %s29, 0
        %s280 = scalar_select %p279, %s29, 0
        %s281 = sadd.s32 %s280, %s278
        %s282 = scalar_lea.vmem %s2, %s281
        %s283 = smul.u32 32, %s28
        %p285 = scmp.eq.s32.totalorder %s30, 0
        // Predicated region
        $region41: #{tpu_custom_call.1} parent=31 // pred_check
          %p286 = pneg %p285
        $region42: #{tpu_custom_call.1} parent=31 // pred_check_branch
          %288 = sbr.rel (%p286) target = $region44
        $region43: #{tpu_custom_call.1} parent=31 // pred_region
          %289 = vst [vmem:[#allocation2] sm:$0xff] 0.0
          %290 = vst [vmem:[#allocation2 + $0x8] sm:$0xff] 0.0
          %291 = vst [vmem:[#allocation2 + $0x10] sm:$0xff] 0.0
          %292 = vst [vmem:[#allocation2 + $0x18] sm:$0xff] 0.0
          %293 = vst [vmem:[#allocation2 + $0x20] sm:$0xff] 0.0
          %294 = vst [vmem:[#allocation2 + $0x28] sm:$0xff] 0.0
          %295 = vst [vmem:[#allocation2 + $0x30] sm:$0xff] 0.0
          %296 = vst [vmem:[#allocation2 + $0x38] sm:$0xff] 0.0
          %297 = vst [vmem:[#allocation2 + $0x40] sm:$0xff] 0.0
          %298 = vst [vmem:[#allocation2 + $0x48] sm:$0xff] 0.0
          %299 = vst [vmem:[#allocation2 + $0x50] sm:$0xff] 0.0
          %300 = vst [vmem:[#allocation2 + $0x58] sm:$0xff] 0.0
          %301 = vst [vmem:[#allocation2 + $0x60] sm:$0xff] 0.0
          %302 = vst [vmem:[#allocation2 + $0x68] sm:$0xff] 0.0
          %303 = vst [vmem:[#allocation2 + $0x70] sm:$0xff] 0.0
          %304 = vst [vmem:[#allocation2 + $0x78] sm:$0xff] 0.0
          %305 = vst [vmem:[#allocation2 + $0x80] sm:$0xff] 0.0
          %306 = vst [vmem:[#allocation2 + $0x88] sm:$0xff] 0.0
          %307 = vst [vmem:[#allocation2 + $0x90] sm:$0xff] 0.0
          %308 = vst [vmem:[#allocation2 + $0x98] sm:$0xff] 0.0
          %309 = vst [vmem:[#allocation2 + $0xa0] sm:$0xff] 0.0
          %310 = vst [vmem:[#allocation2 + $0xa8] sm:$0xff] 0.0
          %311 = vst [vmem:[#allocation2 + $0xb0] sm:$0xff] 0.0
          %312 = vst [vmem:[#allocation2 + $0xb8] sm:$0xff] 0.0
          %313 = vst [vmem:[#allocation2 + $0xc0] sm:$0xff] 0.0
          %314 = vst [vmem:[#allocation2 + $0xc8] sm:$0xff] 0.0
          %315 = vst [vmem:[#allocation2 + $0xd0] sm:$0xff] 0.0
          %316 = vst [vmem:[#allocation2 + $0xd8] sm:$0xff] 0.0
          %317 = vst [vmem:[#allocation2 + $0xe0] sm:$0xff] 0.0
          %318 = vst [vmem:[#allocation2 + $0xe8] sm:$0xff] 0.0
          %319 = vst [vmem:[#allocation2 + $0xf0] sm:$0xff] 0.0
          %320 = vst [vmem:[#allocation2 + $0xf8] sm:$0xff] 0.0
        $region44: #{tpu_custom_call.1} parent=31 // pred_fallthru
          _
        %v321 = vld [vmem:[#allocation2] sm:$0xff]
        %v322 = vld [vmem:[#allocation2 + $0x8] sm:$0xff]
        %v323 = vld [vmem:[#allocation2 + $0x10] sm:$0xff]
        %v324 = vld [vmem:[#allocation2 + $0x18] sm:$0xff]
        %v325 = vld [vmem:[#allocation2 + $0x20] sm:$0xff]
        %v326 = vld [vmem:[#allocation2 + $0x28] sm:$0xff]
        %v327 = vld [vmem:[#allocation2 + $0x30] sm:$0xff]
        %v328 = vld [vmem:[#allocation2 + $0x38] sm:$0xff]
        %v329 = vld [vmem:[#allocation2 + $0x40] sm:$0xff]
        %v330 = vld [vmem:[#allocation2 + $0x48] sm:$0xff]
        %v331 = vld [vmem:[#allocation2 + $0x50] sm:$0xff]
        %v332 = vld [vmem:[#allocation2 + $0x58] sm:$0xff]
        %v333 = vld [vmem:[#allocation2 + $0x60] sm:$0xff]
        %v334 = vld [vmem:[#allocation2 + $0x68] sm:$0xff]
        %v335 = vld [vmem:[#allocation2 + $0x70] sm:$0xff]
        %v336 = vld [vmem:[#allocation2 + $0x78] sm:$0xff]
        %v337 = vld [vmem:[#allocation2 + $0x80] sm:$0xff]
        %v338 = vld [vmem:[#allocation2 + $0x88] sm:$0xff]
        %v339 = vld [vmem:[#allocation2 + $0x90] sm:$0xff]
        %v340 = vld [vmem:[#allocation2 + $0x98] sm:$0xff]
        %v341 = vld [vmem:[#allocation2 + $0xa0] sm:$0xff]
        %v342 = vld [vmem:[#allocation2 + $0xa8] sm:$0xff]
        %v343 = vld [vmem:[#allocation2 + $0xb0] sm:$0xff]
        %v344 = vld [vmem:[#allocation2 + $0xb8] sm:$0xff]
        %v345 = vld [vmem:[#allocation2 + $0xc0] sm:$0xff]
        %v346 = vld [vmem:[#allocation2 + $0xc8] sm:$0xff]
        %v347 = vld [vmem:[#allocation2 + $0xd0] sm:$0xff]
        %v348 = vld [vmem:[#allocation2 + $0xd8] sm:$0xff]
        %v349 = vld [vmem:[#allocation2 + $0xe0] sm:$0xff]
        %v350 = vld [vmem:[#allocation2 + $0xe8] sm:$0xff]
        %v351 = vld [vmem:[#allocation2 + $0xf0] sm:$0xff]
        %v352 = vld [vmem:[#allocation2 + $0xf8] sm:$0xff]
        %v353 = vld [vmem:[%s242] sm:$0xf]
        %v354 = vld [vmem:[%s242 + $0x4] sm:$0xf]
        %v355 = vld [vmem:[%s242 + $0x8] sm:$0xf]
        %v356 = vld [vmem:[%s242 + $0xc] sm:$0xf]
        %v357 = vld [vmem:[%s242 + $0x10] sm:$0xf]
        %v358 = vld [vmem:[%s242 + $0x14] sm:$0xf]
        %v359 = vld [vmem:[%s242 + $0x18] sm:$0xf]
        %v360 = vld [vmem:[%s242 + $0x1c] sm:$0xf]
        %v361 = vld [vmem:[%s242 + $0x20] sm:$0xf]
        %v362 = vld [vmem:[%s242 + $0x24] sm:$0xf]
        %v363 = vld [vmem:[%s242 + $0x28] sm:$0xf]
        %v364 = vld [vmem:[%s242 + $0x2c] sm:$0xf]
        %v365 = vld [vmem:[%s242 + $0x30] sm:$0xf]
        %v366 = vld [vmem:[%s242 + $0x34] sm:$0xf]
        %v367 = vld [vmem:[%s242 + $0x38] sm:$0xf]
        %v368 = vld [vmem:[%s242 + $0x3c] sm:$0xf]
        %v369 = vld [vmem:[%s242 + $0x40] sm:$0xf]
        %v370 = vld [vmem:[%s242 + $0x44] sm:$0xf]
        %v371 = vld [vmem:[%s242 + $0x48] sm:$0xf]
        %v372 = vld [vmem:[%s242 + $0x4c] sm:$0xf]
        %v373 = vld [vmem:[%s242 + $0x50] sm:$0xf]
        %v374 = vld [vmem:[%s242 + $0x54] sm:$0xf]
        %v375 = vld [vmem:[%s242 + $0x58] sm:$0xf]
        %v376 = vld [vmem:[%s242 + $0x5c] sm:$0xf]
        %v377 = vld [vmem:[%s242 + $0x60] sm:$0xf]
        %v378 = vld [vmem:[%s242 + $0x64] sm:$0xf]
        %v379 = vld [vmem:[%s242 + $0x68] sm:$0xf]
        %v380 = vld [vmem:[%s242 + $0x6c] sm:$0xf]
        %v381 = vld [vmem:[%s242 + $0x70] sm:$0xf]
        %v382 = vld [vmem:[%s242 + $0x74] sm:$0xf]
        %v383 = vld [vmem:[%s242 + $0x78] sm:$0xf]
        %v384 = vld [vmem:[%s242 + $0x7c] sm:$0xf]
        %v385 = vld [vmem:[#allocation6] sm:$0xf]
        %v386 = vld [vmem:[#allocation6 + $0x4] sm:$0xf]
        %v387 = vld [vmem:[#allocation6 + $0x8] sm:$0xf]
        %v388 = vld [vmem:[#allocation6 + $0xc] sm:$0xf]
        %v389 = vld [vmem:[#allocation6 + $0x10] sm:$0xf]
        %v390 = vld [vmem:[#allocation6 + $0x14] sm:$0xf]
        %v391 = vld [vmem:[#allocation6 + $0x18] sm:$0xf]
        %v392 = vld [vmem:[#allocation6 + $0x1c] sm:$0xf]
        %v393 = vld [vmem:[#allocation6 + $0x20] sm:$0xf]
        %v394 = vld [vmem:[#allocation6 + $0x24] sm:$0xf]
        %v395 = vld [vmem:[#allocation6 + $0x28] sm:$0xf]
        %v396 = vld [vmem:[#allocation6 + $0x2c] sm:$0xf]
        %v397 = vld [vmem:[#allocation6 + $0x30] sm:$0xf]
        %v398 = vld [vmem:[#allocation6 + $0x34] sm:$0xf]
        %v399 = vld [vmem:[#allocation6 + $0x38] sm:$0xf]
        %v400 = vld [vmem:[#allocation6 + $0x3c] sm:$0xf]
        %v433 = vunpack.c.l.b16 %v353
        %v434 = vunpack.c.l.b16 %v354
        %v435 = vunpack.c.l.b16 %v355
        %v436 = vunpack.c.l.b16 %v356
        %v437 = vunpack.c.l.b16 %v357
        %v438 = vunpack.c.l.b16 %v358
        %v439 = vunpack.c.l.b16 %v359
        %v440 = vunpack.c.l.b16 %v360
        %v441 = vunpack.c.l.b16 %v361
        %v442 = vunpack.c.l.b16 %v362
        %v443 = vunpack.c.l.b16 %v363
        %v444 = vunpack.c.l.b16 %v364
        %v445 = vunpack.c.l.b16 %v365
        %v446 = vunpack.c.l.b16 %v366
        %v447 = vunpack.c.l.b16 %v367
        %v448 = vunpack.c.l.b16 %v368
        %v449 = vunpack.c.l.b16 %v369
        %v450 = vunpack.c.l.b16 %v370
        %v451 = vunpack.c.l.b16 %v371
        %v452 = vunpack.c.l.b16 %v372
        %v453 = vunpack.c.l.b16 %v373
        %v454 = vunpack.c.l.b16 %v374
        %v455 = vunpack.c.l.b16 %v375
        %v456 = vunpack.c.l.b16 %v376
        %v457 = vunpack.c.l.b16 %v377
        %v458 = vunpack.c.l.b16 %v378
        %v459 = vunpack.c.l.b16 %v379
        %v460 = vunpack.c.l.b16 %v380
        %v461 = vunpack.c.l.b16 %v381
        %v462 = vunpack.c.l.b16 %v382
        %v463 = vunpack.c.l.b16 %v383
        %v464 = vunpack.c.l.b16 %v384
        %v465 = vpack.c.b16 %v434, %v433
        %v466 = vpack.c.b16 %v436, %v435
        %v467 = vpack.c.b16 %v438, %v437
        %v468 = vpack.c.b16 %v440, %v439
        %v469 = vpack.c.b16 %v442, %v441
        %v470 = vpack.c.b16 %v444, %v443
        %v471 = vpack.c.b16 %v446, %v445
        %v472 = vpack.c.b16 %v448, %v447
        %v473 = vpack.c.b16 %v450, %v449
        %v474 = vpack.c.b16 %v452, %v451
        %v475 = vpack.c.b16 %v454, %v453
        %v476 = vpack.c.b16 %v456, %v455
        %v477 = vpack.c.b16 %v458, %v457
        %v478 = vpack.c.b16 %v460, %v459
        %v479 = vpack.c.b16 %v462, %v461
        %v480 = vpack.c.b16 %v464, %v463
        %v513 = vunpack.c.l.b16 %v385
        %v514 = vunpack.c.l.b16 %v386
        %v515 = vunpack.c.l.b16 %v387
        %v516 = vunpack.c.l.b16 %v388
        %v517 = vunpack.c.l.b16 %v389
        %v518 = vunpack.c.l.b16 %v390
        %v519 = vunpack.c.l.b16 %v391
        %v520 = vunpack.c.l.b16 %v392
        %v521 = vunpack.c.l.b16 %v393
        %v522 = vunpack.c.l.b16 %v394
        %v523 = vunpack.c.l.b16 %v395
        %v524 = vunpack.c.l.b16 %v396
        %v525 = vunpack.c.l.b16 %v397
        %v526 = vunpack.c.l.b16 %v398
        %v527 = vunpack.c.l.b16 %v399
        %v528 = vunpack.c.l.b16 %v400
        %v529 = vpack.c.b16 %v514, %v513
        %v530 = vpack.c.b16 %v516, %v515
        %v531 = vpack.c.b16 %v518, %v517
        %v532 = vpack.c.b16 %v520, %v519
        %v533 = vpack.c.b16 %v522, %v521
        %v534 = vpack.c.b16 %v524, %v523
        %v535 = vpack.c.b16 %v526, %v525
        %v536 = vpack.c.b16 %v528, %v527
        %545 = vmatprep.subr.bf16.mxu0 0
        %546 = vmatpush1.bf16.msra.mxu0 %v536
        %547 = vmatprep.subr.bf16.mxu0 0
        %548 = vmatpush1.bf16.msra.mxu0 %v535
        %549 = vmatprep.subr.bf16.mxu0 0
        %550 = vmatpush1.bf16.msra.mxu0 %v534
        %551 = vmatprep.subr.bf16.mxu0 0
        %552 = vmatpush1.bf16.msra.mxu0 %v533
        %553 = vmatprep.subr.bf16.mxu0 0
        %554 = vmatpush1.bf16.msra.mxu0 %v532
        %555 = vmatprep.subr.bf16.mxu0 0
        %556 = vmatpush1.bf16.msra.mxu0 %v531
        %557 = vmatprep.subr.bf16.mxu0 0
        %558 = vmatpush1.bf16.msra.mxu0 %v530
        %559 = vmatprep.subr.bf16.mxu0 0
        %560 = vmatpush1.bf16.msra.mxu0 %v529
        %561 = vmatprep.subr.bf16.mxu0 0
        %562 = vmatpush2.bf16.msra.mxu0 0
        %563 = vmatprep.subr.bf16.mxu0 0
        %564 = vmatpush2.bf16.msra.mxu0 0
        %565 = vmatprep.subr.bf16.mxu0 0
        %566 = vmatpush2.bf16.msra.mxu0 0
        %567 = vmatprep.subr.bf16.mxu0 0
        %568 = vmatpush2.bf16.msra.mxu0 0
        %569 = vmatprep.subr.bf16.mxu0 0
        %570 = vmatpush2.bf16.msra.mxu0 0
        %571 = vmatprep.subr.bf16.mxu0 0
        %572 = vmatpush2.bf16.msra.mxu0 0
        %573 = vmatprep.subr.bf16.mxu0 0
        %574 = vmatpush2.bf16.msra.mxu0 0
        %575 = vmatprep.subr.bf16.mxu0 0
        %576 = vmatpush2.bf16.msra.mxu0 0
        %577 = vmatprep.mubr.bf16.mxu0 0
        %578 = vmatmul.mubr.bf16.gmra.mxu0 %v465
        %v579 = vpop.f32.mrf.mxu0
        %v580 = vadd.f32 0.0, %v579
        %v581 = vpop.f32.mrf.mxu0
        %v582 = vpop.f32.mrf.mxu0
        %v583 = vadd.f32 0.0, %v582
        %v584 = vpop.f32.mrf.mxu0
        %585 = vmatprep.mubr.bf16.mxu0 0
        %586 = vmatmul.mubr.bf16.gmra.mxu0 %v466
        %v587 = vpop.f32.mrf.mxu0
        %v588 = vadd.f32 0.0, %v587
        %v589 = vpop.f32.mrf.mxu0
        %v590 = vpop.f32.mrf.mxu0
        %v591 = vadd.f32 0.0, %v590
        %v592 = vpop.f32.mrf.mxu0
        %593 = vmatprep.mubr.bf16.mxu0 0
        %594 = vmatmul.mubr.bf16.gmra.mxu0 %v467
        %v595 = vpop.f32.mrf.mxu0
        %v596 = vadd.f32 0.0, %v595
        %v597 = vpop.f32.mrf.mxu0
        %v598 = vpop.f32.mrf.mxu0
        %v599 = vadd.f32 0.0, %v598
        %v600 = vpop.f32.mrf.mxu0
        %601 = vmatprep.mubr.bf16.mxu0 0
        %602 = vmatmul.mubr.bf16.gmra.mxu0 %v468
        %v603 = vpop.f32.mrf.mxu0
        %v604 = vadd.f32 0.0, %v603
        %v605 = vpop.f32.mrf.mxu0
        %v606 = vpop.f32.mrf.mxu0
        %v607 = vadd.f32 0.0, %v606
        %v608 = vpop.f32.mrf.mxu0
        %609 = vmatprep.mubr.bf16.mxu0 0
        %610 = vmatmul.mubr.bf16.gmra.mxu0 %v469
        %v611 = vpop.f32.mrf.mxu0
        %v612 = vadd.f32 0.0, %v611
        %v613 = vpop.f32.mrf.mxu0
        %v614 = vpop.f32.mrf.mxu0
        %v615 = vadd.f32 0.0, %v614
        %v616 = vpop.f32.mrf.mxu0
        %617 = vmatprep.mubr.bf16.mxu0 0
        %618 = vmatmul.mubr.bf16.gmra.mxu0 %v470
        %v619 = vpop.f32.mrf.mxu0
        %v620 = vadd.f32 0.0, %v619
        %v621 = vpop.f32.mrf.mxu0
        %v622 = vpop.f32.mrf.mxu0
        %v623 = vadd.f32 0.0, %v622
        %v624 = vpop.f32.mrf.mxu0
        %625 = vmatprep.mubr.bf16.mxu0 0
        %626 = vmatmul.mubr.bf16.gmra.mxu0 %v471
        %v627 = vpop.f32.mrf.mxu0
        %v628 = vadd.f32 0.0, %v627
        %v629 = vpop.f32.mrf.mxu0
        %v630 = vpop.f32.mrf.mxu0
        %v631 = vadd.f32 0.0, %v630
        %v632 = vpop.f32.mrf.mxu0
        %633 = vmatprep.mubr.bf16.mxu0 0
        %634 = vmatmul.mubr.bf16.gmra.mxu0 %v472
        %v635 = vpop.f32.mrf.mxu0
        %v636 = vadd.f32 0.0, %v635
        %v637 = vpop.f32.mrf.mxu0
        %v638 = vpop.f32.mrf.mxu0
        %v639 = vadd.f32 0.0, %v638
        %v640 = vpop.f32.mrf.mxu0
        %641 = vmatprep.mubr.bf16.mxu0 0
        %642 = vmatmul.mubr.bf16.gmra.mxu0 %v473
        %v643 = vpop.f32.mrf.mxu0
        %v644 = vadd.f32 0.0, %v643
        %v645 = vpop.f32.mrf.mxu0
        %v646 = vpop.f32.mrf.mxu0
        %v647 = vadd.f32 0.0, %v646
        %v648 = vpop.f32.mrf.mxu0
        %649 = vmatprep.mubr.bf16.mxu0 0
        %650 = vmatmul.mubr.bf16.gmra.mxu0 %v474
        %v651 = vpop.f32.mrf.mxu0
        %v652 = vadd.f32 0.0, %v651
        %v653 = vpop.f32.mrf.mxu0
        %v654 = vpop.f32.mrf.mxu0
        %v655 = vadd.f32 0.0, %v654
        %v656 = vpop.f32.mrf.mxu0
        %657 = vmatprep.mubr.bf16.mxu0 0
        %658 = vmatmul.mubr.bf16.gmra.mxu0 %v475
        %v659 = vpop.f32.mrf.mxu0
        %v660 = vadd.f32 0.0, %v659
        %v661 = vpop.f32.mrf.mxu0
        %v662 = vpop.f32.mrf.mxu0
        %v663 = vadd.f32 0.0, %v662
        %v664 = vpop.f32.mrf.mxu0
        %665 = vmatprep.mubr.bf16.mxu0 0
        %666 = vmatmul.mubr.bf16.gmra.mxu0 %v476
        %v667 = vpop.f32.mrf.mxu0
        %v668 = vadd.f32 0.0, %v667
        %v669 = vpop.f32.mrf.mxu0
        %v670 = vpop.f32.mrf.mxu0
        %v671 = vadd.f32 0.0, %v670
        %v672 = vpop.f32.mrf.mxu0
        %673 = vmatprep.mubr.bf16.mxu0 0
        %674 = vmatmul.mubr.bf16.gmra.mxu0 %v477
        %v675 = vpop.f32.mrf.mxu0
        %v676 = vadd.f32 0.0, %v675
        %v677 = vpop.f32.mrf.mxu0
        %v678 = vpop.f32.mrf.mxu0
        %v679 = vadd.f32 0.0, %v678
        %v680 = vpop.f32.mrf.mxu0
        %681 = vmatprep.mubr.bf16.mxu0 0
        %682 = vmatmul.mubr.bf16.gmra.mxu0 %v478
        %v683 = vpop.f32.mrf.mxu0
        %v684 = vadd.f32 0.0, %v683
        %v685 = vpop.f32.mrf.mxu0
        %v686 = vpop.f32.mrf.mxu0
        %v687 = vadd.f32 0.0, %v686
        %v688 = vpop.f32.mrf.mxu0
        %689 = vmatprep.mubr.bf16.mxu0 0
        %690 = vmatmul.mubr.bf16.gmra.mxu0 %v479
        %v691 = vpop.f32.mrf.mxu0
        %v692 = vadd.f32 0.0, %v691
        %v693 = vpop.f32.mrf.mxu0
        %v694 = vpop.f32.mrf.mxu0
        %v695 = vadd.f32 0.0, %v694
        %v696 = vpop.f32.mrf.mxu0
        %697 = vmatprep.mubr.bf16.mxu0 0
        %698 = vmatmul.mubr.bf16.gmra.mxu0 %v480
        %v699 = vpop.f32.mrf.mxu0
        %v700 = vadd.f32 0.0, %v699
        %v701 = vpop.f32.mrf.mxu0
        %v702 = vpop.f32.mrf.mxu0
        %v703 = vadd.f32 0.0, %v702
        %v704 = vpop.f32.mrf.mxu0
        %705 = vdwg.mxu0
        %v706 = vadd.f32 %v321, %v580
        %v707 = vadd.f32 %v322, %v583
        %v708 = vadd.f32 %v323, %v588
        %v709 = vadd.f32 %v324, %v591
        %v710 = vadd.f32 %v325, %v596
        %v711 = vadd.f32 %v326, %v599
        %v712 = vadd.f32 %v327, %v604
        %v713 = vadd.f32 %v328, %v607
        %v714 = vadd.f32 %v329, %v612
        %v715 = vadd.f32 %v330, %v615
        %v716 = vadd.f32 %v331, %v620
        %v717 = vadd.f32 %v332, %v623
        %v718 = vadd.f32 %v333, %v628
        %v719 = vadd.f32 %v334, %v631
        %v720 = vadd.f32 %v335, %v636
        %v721 = vadd.f32 %v336, %v639
        %v722 = vadd.f32 %v337, %v644
        %v723 = vadd.f32 %v338, %v647
        %v724 = vadd.f32 %v339, %v652
        %v725 = vadd.f32 %v340, %v655
        %v726 = vadd.f32 %v341, %v660
        %v727 = vadd.f32 %v342, %v663
        %v728 = vadd.f32 %v343, %v668
        %v729 = vadd.f32 %v344, %v671
        %v730 = vadd.f32 %v345, %v676
        %v731 = vadd.f32 %v346, %v679
        %v732 = vadd.f32 %v347, %v684
        %v733 = vadd.f32 %v348, %v687
        %v734 = vadd.f32 %v349, %v692
        %v735 = vadd.f32 %v350, %v695
        %v736 = vadd.f32 %v351, %v700
        %v737 = vadd.f32 %v352, %v703
        %738 = vst [vmem:[#allocation2] sm:$0xff] %v706
        %739 = vst [vmem:[#allocation2 + $0x8] sm:$0xff] %v707
        %740 = vst [vmem:[#allocation2 + $0x10] sm:$0xff] %v708
        %741 = vst [vmem:[#allocation2 + $0x18] sm:$0xff] %v709
        %742 = vst [vmem:[#allocation2 + $0x20] sm:$0xff] %v710
        %743 = vst [vmem:[#allocation2 + $0x28] sm:$0xff] %v711
        %744 = vst [vmem:[#allocation2 + $0x30] sm:$0xff] %v712
        %745 = vst [vmem:[#allocation2 + $0x38] sm:$0xff] %v713
        %746 = vst [vmem:[#allocation2 + $0x40] sm:$0xff] %v714
        %747 = vst [vmem:[#allocation2 + $0x48] sm:$0xff] %v715
        %748 = vst [vmem:[#allocation2 + $0x50] sm:$0xff] %v716
        %749 = vst [vmem:[#allocation2 + $0x58] sm:$0xff] %v717
        %750 = vst [vmem:[#allocation2 + $0x60] sm:$0xff] %v718
        %751 = vst [vmem:[#allocation2 + $0x68] sm:$0xff] %v719
        %752 = vst [vmem:[#allocation2 + $0x70] sm:$0xff] %v720
        %753 = vst [vmem:[#allocation2 + $0x78] sm:$0xff] %v721
        %754 = vst [vmem:[#allocation2 + $0x80] sm:$0xff] %v722
        %755 = vst [vmem:[#allocation2 + $0x88] sm:$0xff] %v723
        %756 = vst [vmem:[#allocation2 + $0x90] sm:$0xff] %v724
        %757 = vst [vmem:[#allocation2 + $0x98] sm:$0xff] %v725
        %758 = vst [vmem:[#allocation2 + $0xa0] sm:$0xff] %v726
        %759 = vst [vmem:[#allocation2 + $0xa8] sm:$0xff] %v727
        %760 = vst [vmem:[#allocation2 + $0xb0] sm:$0xff] %v728
        %761 = vst [vmem:[#allocation2 + $0xb8] sm:$0xff] %v729
        %762 = vst [vmem:[#allocation2 + $0xc0] sm:$0xff] %v730
        %763 = vst [vmem:[#allocation2 + $0xc8] sm:$0xff] %v731
        %764 = vst [vmem:[#allocation2 + $0xd0] sm:$0xff] %v732
        %765 = vst [vmem:[#allocation2 + $0xd8] sm:$0xff] %v733
        %766 = vst [vmem:[#allocation2 + $0xe0] sm:$0xff] %v734
        %767 = vst [vmem:[#allocation2 + $0xe8] sm:$0xff] %v735
        %768 = vst [vmem:[#allocation2 + $0xf0] sm:$0xff] %v736
        %769 = vst [vmem:[#allocation2 + $0xf8] sm:$0xff] %v737
        // Predicated region
        $region45: #{tpu_custom_call.1} parent=31 // pred_check
          %p770 = pneg %p285
        $region46: #{tpu_custom_call.1} parent=31 // pred_check_branch
          %772 = sbr.rel (%p770) target = $region48
        $region47: #{tpu_custom_call.1} parent=31 // pred_region
          %v773 = vld [vmem:[#allocation2] sm:$0xff]
          %v774 = vld [vmem:[#allocation2 + $0x8] sm:$0xff]
          %v775 = vld [vmem:[#allocation2 + $0x10] sm:$0xff]
          %v776 = vld [vmem:[#allocation2 + $0x18] sm:$0xff]
          %v777 = vld [vmem:[#allocation2 + $0x20] sm:$0xff]
          %v778 = vld [vmem:[#allocation2 + $0x28] sm:$0xff]
          %v779 = vld [vmem:[#allocation2 + $0x30] sm:$0xff]
          %v780 = vld [vmem:[#allocation2 + $0x38] sm:$0xff]
          %v781 = vld [vmem:[#allocation2 + $0x40] sm:$0xff]
          %v782 = vld [vmem:[#allocation2 + $0x48] sm:$0xff]
          %v783 = vld [vmem:[#allocation2 + $0x50] sm:$0xff]
          %v784 = vld [vmem:[#allocation2 + $0x58] sm:$0xff]
          %v785 = vld [vmem:[#allocation2 + $0x60] sm:$0xff]
          %v786 = vld [vmem:[#allocation2 + $0x68] sm:$0xff]
          %v787 = vld [vmem:[#allocation2 + $0x70] sm:$0xff]
          %v788 = vld [vmem:[#allocation2 + $0x78] sm:$0xff]
          %v789 = vld [vmem:[#allocation2 + $0x80] sm:$0xff]
          %v790 = vld [vmem:[#allocation2 + $0x88] sm:$0xff]
          %v791 = vld [vmem:[#allocation2 + $0x90] sm:$0xff]
          %v792 = vld [vmem:[#allocation2 + $0x98] sm:$0xff]
          %v793 = vld [vmem:[#allocation2 + $0xa0] sm:$0xff]
          %v794 = vld [vmem:[#allocation2 + $0xa8] sm:$0xff]
          %v795 = vld [vmem:[#allocation2 + $0xb0] sm:$0xff]
          %v796 = vld [vmem:[#allocation2 + $0xb8] sm:$0xff]
          %v797 = vld [vmem:[#allocation2 + $0xc0] sm:$0xff]
          %v798 = vld [vmem:[#allocation2 + $0xc8] sm:$0xff]
          %v799 = vld [vmem:[#allocation2 + $0xd0] sm:$0xff]
          %v800 = vld [vmem:[#allocation2 + $0xd8] sm:$0xff]
          %v801 = vld [vmem:[#allocation2 + $0xe0] sm:$0xff]
          %v802 = vld [vmem:[#allocation2 + $0xe8] sm:$0xff]
          %v803 = vld [vmem:[#allocation2 + $0xf0] sm:$0xff]
          %v804 = vld [vmem:[#allocation2 + $0xf8] sm:$0xff]
          %v805 = vld [vmem:[%s282] sm:$0x1]
          %v807 = vlaneseq
          %v808 = vshrl.u32 %v807, 7
          %v809 = vsub.s32 0, %v808
          %v810 = vrot.slane %v805, %v809
          %v812 = vadd.f32 %v773, %v810
          %v813 = vadd.f32 %v774, %v810
          %v814 = vadd.f32 %v775, %v810
          %v815 = vadd.f32 %v776, %v810
          %v816 = vadd.f32 %v777, %v810
          %v817 = vadd.f32 %v778, %v810
          %v818 = vadd.f32 %v779, %v810
          %v819 = vadd.f32 %v780, %v810
          %v820 = vadd.f32 %v781, %v810
          %v821 = vadd.f32 %v782, %v810
          %v822 = vadd.f32 %v783, %v810
          %v823 = vadd.f32 %v784, %v810
          %v824 = vadd.f32 %v785, %v810
          %v825 = vadd.f32 %v786, %v810
          %v826 = vadd.f32 %v787, %v810
          %v827 = vadd.f32 %v788, %v810
          %v828 = vadd.f32 %v789, %v810
          %v829 = vadd.f32 %v790, %v810
          %v830 = vadd.f32 %v791, %v810
          %v831 = vadd.f32 %v792, %v810
          %v832 = vadd.f32 %v793, %v810
          %v833 = vadd.f32 %v794, %v810
          %v834 = vadd.f32 %v795, %v810
          %v835 = vadd.f32 %v796, %v810
          %v836 = vadd.f32 %v797, %v810
          %v837 = vadd.f32 %v798, %v810
          %v838 = vadd.f32 %v799, %v810
          %v839 = vadd.f32 %v800, %v810
          %v840 = vadd.f32 %v801, %v810
          %v841 = vadd.f32 %v802, %v810
          %v842 = vadd.f32 %v803, %v810
          %v843 = vadd.f32 %v804, %v810
          %v844 = vsub.f32 0.0, %v812
          %v845 = vsub.f32 0.0, %v813
          %v846 = vsub.f32 0.0, %v814
          %v847 = vsub.f32 0.0, %v815
          %v848 = vsub.f32 0.0, %v816
          %v849 = vsub.f32 0.0, %v817
          %v850 = vsub.f32 0.0, %v818
          %v851 = vsub.f32 0.0, %v819
          %v852 = vsub.f32 0.0, %v820
          %v853 = vsub.f32 0.0, %v821
          %v854 = vsub.f32 0.0, %v822
          %v855 = vsub.f32 0.0, %v823
          %v856 = vsub.f32 0.0, %v824
          %v857 = vsub.f32 0.0, %v825
          %v858 = vsub.f32 0.0, %v826
          %v859 = vsub.f32 0.0, %v827
          %v860 = vsub.f32 0.0, %v828
          %v861 = vsub.f32 0.0, %v829
          %v862 = vsub.f32 0.0, %v830
          %v863 = vsub.f32 0.0, %v831
          %v864 = vsub.f32 0.0, %v832
          %v865 = vsub.f32 0.0, %v833
          %v866 = vsub.f32 0.0, %v834
          %v867 = vsub.f32 0.0, %v835
          %v868 = vsub.f32 0.0, %v836
          %v869 = vsub.f32 0.0, %v837
          %v870 = vsub.f32 0.0, %v838
          %v871 = vsub.f32 0.0, %v839
          %v872 = vsub.f32 0.0, %v840
          %v873 = vsub.f32 0.0, %v841
          %v874 = vsub.f32 0.0, %v842
          %v875 = vsub.f32 0.0, %v843
          %v876 = vmul.f32 %v844, 1.442695
          %v877 = vpow.pop %v876
          %v878 = vmul.f32 %v845, 1.442695
          %v879 = vpow.pop %v878
          %v880 = vmul.f32 %v846, 1.442695
          %v881 = vpow.pop %v880
          %v882 = vmul.f32 %v847, 1.442695
          %v883 = vpow.pop %v882
          %v884 = vmul.f32 %v848, 1.442695
          %v885 = vpow.pop %v884
          %v886 = vmul.f32 %v849, 1.442695
          %v887 = vpow.pop %v886
          %v888 = vmul.f32 %v850, 1.442695
          %v889 = vpow.pop %v888
          %v890 = vmul.f32 %v851, 1.442695
          %v891 = vpow.pop %v890
          %v892 = vmul.f32 %v852, 1.442695
          %v893 = vpow.pop %v892
          %v894 = vmul.f32 %v853, 1.442695
          %v895 = vpow.pop %v894
          %v896 = vmul.f32 %v854, 1.442695
          %v897 = vpow.pop %v896
          %v898 = vmul.f32 %v855, 1.442695
          %v899 = vpow.pop %v898
          %v900 = vmul.f32 %v856, 1.442695
          %v901 = vpow.pop %v900
          %v902 = vmul.f32 %v857, 1.442695
          %v903 = vpow.pop %v902
          %v904 = vmul.f32 %v858, 1.442695
          %v905 = vpow.pop %v904
          %v906 = vmul.f32 %v859, 1.442695
          %v907 = vpow.pop %v906
          %v908 = vmul.f32 %v860, 1.442695
          %v909 = vpow.pop %v908
          %v910 = vmul.f32 %v861, 1.442695
          %v911 = vpow.pop %v910
          %v912 = vmul.f32 %v862, 1.442695
          %v913 = vpow.pop %v912
          %v914 = vmul.f32 %v863, 1.442695
          %v915 = vpow.pop %v914
          %v916 = vmul.f32 %v864, 1.442695
          %v917 = vpow.pop %v916
          %v918 = vmul.f32 %v865, 1.442695
          %v919 = vpow.pop %v918
          %v920 = vmul.f32 %v866, 1.442695
          %v921 = vpow.pop %v920
          %v922 = vmul.f32 %v867, 1.442695
          %v923 = vpow.pop %v922
          %v924 = vmul.f32 %v868, 1.442695
          %v925 = vpow.pop %v924
          %v926 = vmul.f32 %v869, 1.442695
          %v927 = vpow.pop %v926
          %v928 = vmul.f32 %v870, 1.442695
          %v929 = vpow.pop %v928
          %v930 = vmul.f32 %v871, 1.442695
          %v931 = vpow.pop %v930
          %v932 = vmul.f32 %v872, 1.442695
          %v933 = vpow.pop %v932
          %v934 = vmul.f32 %v873, 1.442695
          %v935 = vpow.pop %v934
          %v936 = vmul.f32 %v874, 1.442695
          %v937 = vpow.pop %v936
          %v938 = vmul.f32 %v875, 1.442695
          %v939 = vpow.pop %v938
          %v940 = vadd.f32 %v877, 1.0
          %v941 = vadd.f32 %v879, 1.0
          %v942 = vadd.f32 %v881, 1.0
          %v943 = vadd.f32 %v883, 1.0
          %v944 = vadd.f32 %v885, 1.0
          %v945 = vadd.f32 %v887, 1.0
          %v946 = vadd.f32 %v889, 1.0
          %v947 = vadd.f32 %v891, 1.0
          %v948 = vadd.f32 %v893, 1.0
          %v949 = vadd.f32 %v895, 1.0
          %v950 = vadd.f32 %v897, 1.0
          %v951 = vadd.f32 %v899, 1.0
          %v952 = vadd.f32 %v901, 1.0
          %v953 = vadd.f32 %v903, 1.0
          %v954 = vadd.f32 %v905, 1.0
          %v955 = vadd.f32 %v907, 1.0
          %v956 = vadd.f32 %v909, 1.0
          %v957 = vadd.f32 %v911, 1.0
          %v958 = vadd.f32 %v913, 1.0
          %v959 = vadd.f32 %v915, 1.0
          %v960 = vadd.f32 %v917, 1.0
          %v961 = vadd.f32 %v919, 1.0
          %v962 = vadd.f32 %v921, 1.0
          %v963 = vadd.f32 %v923, 1.0
          %v964 = vadd.f32 %v925, 1.0
          %v965 = vadd.f32 %v927, 1.0
          %v966 = vadd.f32 %v929, 1.0
          %v967 = vadd.f32 %v931, 1.0
          %v968 = vadd.f32 %v933, 1.0
          %v969 = vadd.f32 %v935, 1.0
          %v970 = vadd.f32 %v937, 1.0
          %v971 = vadd.f32 %v939, 1.0
          %v972 = vrcp.pop %v940
          %v973 = vrcp.pop %v941
          %v974 = vrcp.pop %v942
          %v975 = vrcp.pop %v943
          %v976 = vrcp.pop %v944
          %v977 = vrcp.pop %v945
          %v978 = vrcp.pop %v946
          %v979 = vrcp.pop %v947
          %v980 = vrcp.pop %v948
          %v981 = vrcp.pop %v949
          %v982 = vrcp.pop %v950
          %v983 = vrcp.pop %v951
          %v984 = vrcp.pop %v952
          %v985 = vrcp.pop %v953
          %v986 = vrcp.pop %v954
          %v987 = vrcp.pop %v955
          %v988 = vrcp.pop %v956
          %v989 = vrcp.pop %v957
          %v990 = vrcp.pop %v958
          %v991 = vrcp.pop %v959
          %v992 = vrcp.pop %v960
          %v993 = vrcp.pop %v961
          %v994 = vrcp.pop %v962
          %v995 = vrcp.pop %v963
          %v996 = vrcp.pop %v964
          %v997 = vrcp.pop %v965
          %v998 = vrcp.pop %v966
          %v999 = vrcp.pop %v967
          %v1000 = vrcp.pop %v968
          %v1001 = vrcp.pop %v969
          %v1002 = vrcp.pop %v970
          %v1003 = vrcp.pop %v971
          %v1004 = vmul.f32 %v812, %v972
          %v1005 = vmul.f32 %v813, %v973
          %v1006 = vmul.f32 %v814, %v974
          %v1007 = vmul.f32 %v815, %v975
          %v1008 = vmul.f32 %v816, %v976
          %v1009 = vmul.f32 %v817, %v977
          %v1010 = vmul.f32 %v818, %v978
          %v1011 = vmul.f32 %v819, %v979
          %v1012 = vmul.f32 %v820, %v980
          %v1013 = vmul.f32 %v821, %v981
          %v1014 = vmul.f32 %v822, %v982
          %v1015 = vmul.f32 %v823, %v983
          %v1016 = vmul.f32 %v824, %v984
          %v1017 = vmul.f32 %v825, %v985
          %v1018 = vmul.f32 %v826, %v986
          %v1019 = vmul.f32 %v827, %v987
          %v1020 = vmul.f32 %v828, %v988
          %v1021 = vmul.f32 %v829, %v989
          %v1022 = vmul.f32 %v830, %v990
          %v1023 = vmul.f32 %v831, %v991
          %v1024 = vmul.f32 %v832, %v992
          %v1025 = vmul.f32 %v833, %v993
          %v1026 = vmul.f32 %v834, %v994
          %v1027 = vmul.f32 %v835, %v995
          %v1028 = vmul.f32 %v836, %v996
          %v1029 = vmul.f32 %v837, %v997
          %v1030 = vmul.f32 %v838, %v998
          %v1031 = vmul.f32 %v839, %v999
          %v1032 = vmul.f32 %v840, %v1000
          %v1033 = vmul.f32 %v841, %v1001
          %v1034 = vmul.f32 %v842, %v1002
          %v1035 = vmul.f32 %v843, %v1003
          %1036 = vst [vmem:[%s274] sm:$0xff] %v1004
          %1037 = vst [vmem:[%s274 + $0x8] sm:$0xff] %v1005
          %1038 = vst [vmem:[%s274 + $0x10] sm:$0xff] %v1006
          %1039 = vst [vmem:[%s274 + $0x18] sm:$0xff] %v1007
          %1040 = vst [vmem:[%s274 + $0x20] sm:$0xff] %v1008
          %1041 = vst [vmem:[%s274 + $0x28] sm:$0xff] %v1009
          %1042 = vst [vmem:[%s274 + $0x30] sm:$0xff] %v1010
          %1043 = vst [vmem:[%s274 + $0x38] sm:$0xff] %v1011
          %1044 = vst [vmem:[%s274 + $0x40] sm:$0xff] %v1012
          %1045 = vst [vmem:[%s274 + $0x48] sm:$0xff] %v1013
          %1046 = vst [vmem:[%s274 + $0x50] sm:$0xff] %v1014
          %1047 = vst [vmem:[%s274 + $0x58] sm:$0xff] %v1015
          %1048 = vst [vmem:[%s274 + $0x60] sm:$0xff] %v1016
          %1049 = vst [vmem:[%s274 + $0x68] sm:$0xff] %v1017
          %1050 = vst [vmem:[%s274 + $0x70] sm:$0xff] %v1018
          %1051 = vst [vmem:[%s274 + $0x78] sm:$0xff] %v1019
          %1052 = vst [vmem:[%s274 + $0x80] sm:$0xff] %v1020
          %1053 = vst [vmem:[%s274 + $0x88] sm:$0xff] %v1021
          %1054 = vst [vmem:[%s274 + $0x90] sm:$0xff] %v1022
          %1055 = vst [vmem:[%s274 + $0x98] sm:$0xff] %v1023
          %1056 = vst [vmem:[%s274 + $0xa0] sm:$0xff] %v1024
          %1057 = vst [vmem:[%s274 + $0xa8] sm:$0xff] %v1025
          %1058 = vst [vmem:[%s274 + $0xb0] sm:$0xff] %v1026
          %1059 = vst [vmem:[%s274 + $0xb8] sm:$0xff] %v1027
          %1060 = vst [vmem:[%s274 + $0xc0] sm:$0xff] %v1028
          %1061 = vst [vmem:[%s274 + $0xc8] sm:$0xff] %v1029
          %1062 = vst [vmem:[%s274 + $0xd0] sm:$0xff] %v1030
          %1063 = vst [vmem:[%s274 + $0xd8] sm:$0xff] %v1031
          %1064 = vst [vmem:[%s274 + $0xe0] sm:$0xff] %v1032
          %1065 = vst [vmem:[%s274 + $0xe8] sm:$0xff] %v1033
          %1066 = vst [vmem:[%s274 + $0xf0] sm:$0xff] %v1034
          %1067 = vst [vmem:[%s274 + $0xf8] sm:$0xff] %v1035
        $region48: #{tpu_custom_call.1} parent=31 // pred_fallthru
          _
        %s1068 = sand.u32 %s147, 1
        %s1069 = scalar_lea.sflag [#allocation5], %s1068
        %s1070 = sand.u32 %s147, 1
        %s1071 = smul.addr %s1070, 256
        %s1072 = scalar_lea.vmem [#allocation8], %s1071
        // Predicated region
        $region49: #{tpu_custom_call.1} parent=31 // pred_check
          %p1073 = pneg %p157
        $region50: #{tpu_custom_call.1} parent=31 // pred_check_branch
          %1075 = sbr.rel (%p1073) target = $region52
        $region51: #{tpu_custom_call.1} parent=31 // pred_region
          %s1076 = smul.u32 32, %s28
          %s1078 = ssub.s32 4096, 4096
          %1079 = vsyncadd %s1069, %s1078
          %s1080 = sadd.s32 %s29, %s1076
          %s1081 = smul.addr %s27, 64
          %s1082 = sadd.s32 %s1080, %s1081
          %s1083 = smul.addr %s1082, 128
          %s1084 = scalar_lea.hbm %s3, %s1083
          %s1085 = sshll.u32 %s1072, 4
          %s1086 = int_to_ptr.vmem [resolvable:$true] %s1085
          %1091 = dma.vmem_to_hbm [thread:$0]  %s1086, 4096, %s1084, %s1069, 128, 128, 8
        $region52: #{tpu_custom_call.1} parent=31 // pred_fallthru
          _
      $region32: #{tpu_custom_call.1} parent=5 // pred_fallthru
        _
      %p1092 = scmp.le.s32.totalorder 2, %s16
      // Predicated region
      $region53: #{tpu_custom_call.1} parent=5 // pred_check
        %p1093 = pneg %p1092
      $region54: #{tpu_custom_call.1} parent=5 // pred_check_branch
        %1095 = sbr.rel (%p1093) target = $region56
      $region55: #{tpu_custom_call.1} parent=5 // pred_region
        %s1096 = ssub.s32 %s16, 2
        // Predicated region
        $region57: #{tpu_custom_call.1} parent=55 // pred_check
          %p1097 = pneg %p163
        $region58: #{tpu_custom_call.1} parent=55 // pred_check_branch
          %1099 = sbr.rel (%p1097) target = $region60
        $region59: #{tpu_custom_call.1} parent=55 // pred_region
          %s1100 = sand.u32 %s148, 1
          %s1101 = scalar_lea.sflag [#allocation5], %s1100
          %s1102 = sand.u32 %s148, 1
          %s1103 = smul.addr %s1102, 256
          %s1104 = scalar_lea.vmem [#allocation8], %s1103
          %1105 = dma.done %s1101, 4096
        $region60: #{tpu_custom_call.1} parent=55 // pred_fallthru
          _
      $region56: #{tpu_custom_call.1} parent=5 // pred_fallthru
        _
    $region6: #{tpu_custom_call.1} parent=1 // loop_footer
      %s20 = sadd.s32 1, %s16
    $region7: #{tpu_custom_call.1} parent=1 // loop_footer_branch
      %15 = sbr.rel target = $region3
    $region8: #{tpu_custom_call.1} parent=1 // loop_exit
      _
    %1106 = vsyncpa [#allocation4], 1
    %s1107 = scalar_lea.sflag [#allocation4], 1
    %1108 = vsyncpa %s1107, 1
    %1109 = vsyncpa [#allocation7], 1
    %1110 = vsyncpa [#allocation5], 1
    %s1111 = scalar_lea.sflag [#allocation5], 1
    %1112 = vsyncpa %s1111, 1

</llo_original>
